<compile_context>
chip_gen: v5e
topology: v5e:2x2
jax: 0.10.0
libtpu: 0.0.40
codegen_flags: <defaults>
</compile_context>

<pallas_src>
import functools
import math

import jax
import jax.numpy as jnp
from jax.experimental import pallas as pl
from jax.experimental.pallas import tpu as pltpu


def _round_up(v, m):
    return ((v + m - 1) // m) * m


def _graph_clf_kernel(x_ref, counts_ref, w1_ref, b1_ref, w2_ref, b2_ref,
                      out_ref, acc_ref, *, pooling_type, tn):
    n_id = pl.program_id(1)
    neg = jnp.finfo(jnp.float32).min

    @pl.when(n_id == 0)
    def _init():
        if pooling_type == "max":
            acc_ref[...] = jnp.full(acc_ref.shape, neg, acc_ref.dtype)
        else:
            acc_ref[...] = jnp.zeros(acc_ref.shape, acc_ref.dtype)

    x = x_ref[...].astype(jnp.float32)            # (TB, TN, F)
    counts = counts_ref[...]                      # (TB, 1) int32
    node_idx = jax.lax.broadcasted_iota(jnp.int32, x.shape, dimension=1) + n_id * tn
    # Masks padding nodes, ragged-tail garbage nodes (idx >= N >= counts) and
    # ragged-tail garbage graphs (padded counts == 0).
    m = node_idx < counts[:, :, None]             # (TB, TN, F) bool

    if pooling_type == "max":
        part = jnp.max(jnp.where(m, x, neg), axis=1)          # (TB, F)
        acc_ref[...] = jnp.maximum(acc_ref[...], part)
    else:  # sum / mean accumulate a masked sum
        part = jnp.sum(jnp.where(m, x, 0.0), axis=1)          # (TB, F)
        acc_ref[...] = acc_ref[...] + part

    @pl.when(n_id == pl.num_programs(1) - 1)
    def _finalize():
        pooled = acc_ref[...]
        if pooling_type == "mean":
            # NOTE: 0-node graphs give 0/0 = NaN, matching the DGL/pure-JAX
            # reference; wrapper-padded tail rows are sliced off anyway.
            pooled = pooled / counts_ref[...].astype(jnp.float32)
        # clf: Linear(F,F) -> exact-erf GELU (torch.nn.GELU default) -> Linear(F,C_pad)
        h = jnp.dot(pooled, w1_ref[...], preferred_element_type=jnp.float32) + b1_ref[...]
        h = 0.5 * h * (1.0 + jax.lax.erf(h * (1.0 / math.sqrt(2.0))))
        out = jnp.dot(h, w2_ref[...], preferred_element_type=jnp.float32) + b2_ref[...]
        out_ref[...] = out.astype(out_ref.dtype)  # (TB, C_pad) lane-dense store


def _resident_spec(shape):
    # Constant index_map => never re-fetched; single-buffer to halve the VMEM
    # footprint of resident weights (matters for large F on v7x's 64 MiB VMEM).
    idx = lambda b, n: (0,) * len(shape)
    try:
        return pl.BlockSpec(shape, idx, pipeline_mode=pl.Buffered(buffer_count=1))
    except (TypeError, AttributeError):  # older jax without pipeline_mode/Buffered
        return pl.BlockSpec(shape, idx)


def graph_classification_head(x, num_nodes, w1, b1, w2, b2, *, pooling_type="mean"):
    """x: [B, N_max, F] dense-padded node features; num_nodes: int [B] real-node counts."""
    if pooling_type not in ("mean", "sum", "max"):
        raise ValueError(f"Unknown pooling type {pooling_type}")
    B, N, F = x.shape
    C = w2.shape[1]
    itemsize = jnp.dtype(x.dtype).itemsize

    # Lane-dense output: pad class dim to a multiple of 128, slice afterwards.
    C_pad = _round_up(max(C, 128), 128)

    # --- generation-aware VMEM budget --------------------------------------
    try:
        vmem_cap = int(pltpu.get_tpu_info().vmem_capacity_bytes)
    except Exception:
        vmem_cap = 64 << 20           # conservative v7x fallback
    budget = int(vmem_cap * 0.7)      # headroom for compiler scratch / semaphores

    def tile_bytes(r, c, isz=4):      # (8,128)-tiled VMEM footprint of a 2-D buffer
        return _round_up(max(r, 1), 8) * _round_up(max(c, 1), 128) * isz

    # TB: graphs per batch grid step.  Keep >=4 batch steps when B allows so each
    # v7x TensorCore still double-buffers after megacore sharding; cap at 256
    # (fills the v6e/v7x 256-row MXU; on v5e's 4x128^2 MXU 256 rows is merely two
    # serial passes, still good for DMA / per-step-overhead amortization).
    if B <= 8:
        TB = B                        # single full block, no sublane padding needed
    else:
        TB = min(256, _round_up(-(-B // 4), 8))

    row_bytes = _round_up(F, 128) * itemsize          # one node row of an x block
    fixed = (tile_bytes(F, F) + tile_bytes(1, F)      # W1, b1 (single-buffered)
             + tile_bytes(F, C_pad) + tile_bytes(1, C_pad)   # W2, b2
             + 2 * tile_bytes(TB, C_pad)              # output double buffer
             + 2 * tile_bytes(TB, 1)                  # counts double buffer
             + tile_bytes(TB, F))                     # accumulator scratch
    x_budget = max(budget - fixed, 2 * 8 * row_bytes)
    if B > 8:  # shrink TB if even TN=8 would blow the x double buffer
        tb_fit = max(8, (x_budget // (2 * 8 * row_bytes)) // 8 * 8)
        TB = min(TB, tb_fit)

    # TN: nodes per reduction grid step (second grid axis, "arbitrary").
    tn_fit = x_budget // (2 * TB * row_bytes)
    TN = N if tn_fit >= N else max(8, int(tn_fit) // 8 * 8)

    B_pad = _round_up(B, TB)
    grid = (B_pad // TB, pl.cdiv(N, TN))

    vmem_limit = int(min(
        vmem_cap,
        max(int((fixed + 2 * TB * _round_up(TN, 8) * row_bytes) * 1.3) + (2 << 20),
            32 << 20)))

    # Only the tiny counts vector is padded (zeros => ragged tail rows fully
    # masked); x itself is fed at its true batch size (no full-HBM-copy pad).
    counts = jnp.asarray(num_nodes, jnp.int32).reshape(B, 1)
    if B_pad != B:
        counts = jnp.pad(counts, ((0, B_pad - B), (0, 0)))
    w2p = jnp.pad(w2, ((0, 0), (0, C_pad - C)))
    b2p = jnp.pad(b2, ((0, 0), (0, C_pad - C)))

    kernel = functools.partial(_graph_clf_kernel, pooling_type=pooling_type, tn=TN)
    out = pl.pallas_call(
        kernel,
        out_shape=jax.ShapeDtypeStruct((B_pad, C_pad), jnp.float32),
        grid=grid,
        in_specs=[
            pl.BlockSpec((TB, TN, F), lambda b, n: (b, n, 0)),   # node features (ragged tail OK)
            pl.BlockSpec((TB, 1), lambda b, n: (b, 0)),          # per-graph node counts
            _resident_spec((F, F)),                              # W1 (resident, single-buffered)
            _resident_spec((1, F)),                              # b1
            _resident_spec((F, C_pad)),                          # W2 (class-padded)
            _resident_spec((1, C_pad)),                          # b2 (class-padded)
        ],
        out_specs=pl.BlockSpec((TB, C_pad), lambda b, n: (b, 0)),
        scratch_shapes=[pltpu.VMEM((TB, F), jnp.float32)],       # pooling accumulator
        compiler_params=pltpu.CompilerParams(
            dimension_semantics=("parallel", "arbitrary"),
            vmem_limit_bytes=vmem_limit),
    )(x, counts, w1, b1, w2p, b2p)

    return out[:B, :C]


def _reference(x, num_nodes, w1, b1, w2, b2, pooling_type="mean"):
    mask = (jnp.arange(x.shape[1])[None, :] < num_nodes[:, None]).astype(jnp.float32)
    if pooling_type == "mean":
        pooled = jnp.sum(x * mask[..., None], axis=1) / num_nodes[:, None].astype(jnp.float32)
    elif pooling_type == "sum":
        pooled = jnp.sum(x * mask[..., None], axis=1)
    else:
        pooled = jnp.max(jnp.where(mask[..., None] > 0, x, jnp.finfo(jnp.float32).min), axis=1)
    h = pooled @ w1 + b1
    h = 0.5 * h * (1.0 + jax.scipy.special.erf(h / jnp.sqrt(2.0)))
    return h @ w2 + b2


if __name__ == "__main__":
    B, N_MAX, F, C = 2, 8, 32, 8           # graphs, max nodes/graph, num_features, num_classes
    num_nodes = jnp.array([6, 8], dtype=jnp.int32)   # graph 0 has 2 padding nodes

    key = jax.random.PRNGKey(0)
    kx, kw1, kb1, kw2, kb2 = jax.random.split(key, 5)

    x = jax.random.normal(kx, (B, N_MAX, F), dtype=jnp.float32)
    node_mask = (jnp.arange(N_MAX)[None, :] < num_nodes[:, None]).astype(jnp.float32)
    x = x * node_mask[..., None]           # zero out padding nodes (as a real pipeline would)

    # Deterministic init mimicking torch nn.Linear defaults: U(-1/sqrt(fan_in), 1/sqrt(fan_in)).
    bound1 = 1.0 / math.sqrt(F)
    w1 = jax.random.uniform(kw1, (F, F), jnp.float32, -bound1, bound1)
    b1 = jax.random.uniform(kb1, (1, F), jnp.float32, -bound1, bound1)
    w2 = jax.random.uniform(kw2, (F, C), jnp.float32, -bound1, bound1)
    b2 = jax.random.uniform(kb2, (1, C), jnp.float32, -bound1, bound1)

    for pooling in ("mean", "sum", "max"):
        out = graph_classification_head(x, num_nodes, w1, b1, w2, b2, pooling_type=pooling)
        out = jax.block_until_ready(out)
        ref = _reference(x, num_nodes, w1, b1, w2, b2, pooling_type=pooling)
        assert out.shape == (B, C), (pooling, out.shape)
        assert jnp.allclose(out, ref, atol=1e-5, rtol=1e-5), (pooling, out, ref)

    print("KERNEL_OK")
</pallas_src>

<mosaic_0001>
module attributes {stable_mosaic.version = 11 : i64} {
  func.func @_graph_clf_kernel(%arg0: i32, %arg1: i32, %arg2: memref<2x8x32xf32, #tpu.memory_space<vmem>>, %arg3: memref<2x1xi32, #tpu.memory_space<vmem>>, %arg4: memref<32x32xf32, #tpu.memory_space<vmem>>, %arg5: memref<1x32xf32, #tpu.memory_space<vmem>>, %arg6: memref<32x128xf32, #tpu.memory_space<vmem>>, %arg7: memref<1x128xf32, #tpu.memory_space<vmem>>, %arg8: memref<2x128xf32, #tpu.memory_space<vmem>>, %arg9: memref<2x32xf32, #tpu.memory_space<vmem>>) attributes {dimension_semantics = [#tpu.dimension_semantics<parallel>, #tpu.dimension_semantics<arbitrary>], iteration_bounds = array<i64: 1, 1>, scalar_prefetch = 0 : i64, scratch_operands = 1 : i64, tpu.core_type = #tpu.core_type<tc>, window_params = [{transform_indices = @transform_0, window_bounds = array<i64: 2, 8, 32>}, {transform_indices = @transform_1, window_bounds = array<i64: 2, 1>}, {pipeline_mode = #tpu.pipeline_mode<synchronous>, transform_indices = @transform_2, window_bounds = array<i64: 32, 32>}, {pipeline_mode = #tpu.pipeline_mode<synchronous>, transform_indices = @transform_3, window_bounds = array<i64: 1, 32>}, {pipeline_mode = #tpu.pipeline_mode<synchronous>, transform_indices = @transform_4, window_bounds = array<i64: 32, 128>}, {pipeline_mode = #tpu.pipeline_mode<synchronous>, transform_indices = @transform_5, window_bounds = array<i64: 1, 128>}, {transform_indices = @transform_6, window_bounds = array<i64: 2, 128>}]} {
    %c0_i32 = arith.constant 0 : i32
    %0 = arith.cmpi eq, %arg1, %c0_i32 : i32
    %1 = arith.extui %0 : i1 to i32
    %c0_i32_0 = arith.constant 0 : i32
    %2 = arith.cmpi ne, %1, %c0_i32_0 : i32
    scf.if %2 {
      %cst_12 = arith.constant 0.000000e+00 : f32
      %21 = vector.broadcast %cst_12 : f32 to vector<2x32xf32>
      %c0_13 = arith.constant 0 : index
      %c0_14 = arith.constant 0 : index
      %22 = vector.load %arg9[%c0_13, %c0_14] : memref<2x32xf32, #tpu.memory_space<vmem>>, vector<2x32xf32>
      tpu.vector_store %arg9[%c0_13, %c0_14], %21 {strides = array<i32>} : memref<2x32xf32, #tpu.memory_space<vmem>>, vector<2x32xf32>,
    } else {
    }
    %c0 = arith.constant 0 : index
    %c0_1 = arith.constant 0 : index
    %c0_2 = arith.constant 0 : index
    %3 = vector.load %arg2[%c0, %c0_1, %c0_2] : memref<2x8x32xf32, #tpu.memory_space<vmem>>, vector<2x8x32xf32>
    %c0_3 = arith.constant 0 : index
    %c0_4 = arith.constant 0 : index
    %4 = vector.load %arg3[%c0_3, %c0_4] : memref<2x1xi32, #tpu.memory_space<vmem>>, vector<2x1xi32>
    %5 = tpu.iota {dimensions = array<i32: 1>} : vector<2x8x32xi32>
    %c8_i32 = arith.constant 8 : i32
    %6 = arith.muli %arg1, %c8_i32 : i32
    %7 = vector.broadcast %6 : i32 to vector<2x8x32xi32>
    %8 = arith.addi %5, %7 : vector<2x8x32xi32>
    %9 = vector.shape_cast %4 : vector<2x1xi32> to vector<2x1x1xi32>
    %10 = vector.broadcast %9 : vector<2x1x1xi32> to vector<2x8x32xi32>
    %11 = arith.cmpi slt, %8, %10 : vector<2x8x32xi32>
    %cst = arith.constant 0.000000e+00 : f32
    %12 = vector.broadcast %cst : f32 to vector<2x8x32xf32>
    %13 = arith.select %11, %3, %12 : vector<2x8x32xi1>, vector<2x8x32xf32>
    %cst_5 = arith.constant dense<0.000000e+00> : vector<2x32xf32>
    %14 = vector.multi_reduction <add>, %13, %cst_5 [1] : vector<2x8x32xf32> to vector<2x32xf32>
    %c0_6 = arith.constant 0 : index
    %c0_7 = arith.constant 0 : index
    %15 = vector.load %arg9[%c0_6, %c0_7] : memref<2x32xf32, #tpu.memory_space<vmem>>, vector<2x32xf32>
    %16 = arith.addf %15, %14 : vector<2x32xf32>
    %c0_8 = arith.constant 0 : index
    %c0_9 = arith.constant 0 : index
    %17 = vector.load %arg9[%c0_8, %c0_9] : memref<2x32xf32, #tpu.memory_space<vmem>>, vector<2x32xf32>
    tpu.vector_store %arg9[%c0_8, %c0_9], %16 {strides = array<i32>} : memref<2x32xf32, #tpu.memory_space<vmem>>, vector<2x32xf32>,
    %c0_i32_10 = arith.constant 0 : i32
    %18 = arith.cmpi eq, %arg1, %c0_i32_10 : i32
    %19 = arith.extui %18 : i1 to i32
    %c0_i32_11 = arith.constant 0 : i32
    %20 = arith.cmpi ne, %19, %c0_i32_11 : i32
    scf.if %20 {
      %c0_12 = arith.constant 0 : index
      %c0_13 = arith.constant 0 : index
      %21 = vector.load %arg9[%c0_12, %c0_13] : memref<2x32xf32, #tpu.memory_space<vmem>>, vector<2x32xf32>
      %c0_14 = arith.constant 0 : index
      %c0_15 = arith.constant 0 : index
      %22 = vector.load %arg3[%c0_14, %c0_15] : memref<2x1xi32, #tpu.memory_space<vmem>>, vector<2x1xi32>
      %23 = arith.sitofp %22 : vector<2x1xi32> to vector<2x1xf32>
      %24 = vector.broadcast %23 : vector<2x1xf32> to vector<2x32xf32>
      %25 = arith.divf %21, %24 : vector<2x32xf32>
      %c0_16 = arith.constant 0 : index
      %c0_17 = arith.constant 0 : index
      %26 = vector.load %arg4[%c0_16, %c0_17] : memref<32x32xf32, #tpu.memory_space<vmem>>, vector<32x32xf32>
      %cst_18 = arith.constant dense<0.000000e+00> : vector<2x32xf32>
      %27 = tpu.matmul %25, %26, %cst_18 {dimension_numbers = #tpu.dot_dimension_numbers<[1], [0], [0], [1], [0, 0, 1, 1], [], []>} : vector<2x32xf32>, vector<32x32xf32>, vector<2x32xf32> -> vector<2x32xf32>
      %c0_19 = arith.constant 0 : index
      %c0_20 = arith.constant 0 : index
      %28 = vector.load %arg5[%c0_19, %c0_20] : memref<1x32xf32, #tpu.memory_space<vmem>>, vector<1x32xf32>
      %29 = vector.broadcast %28 : vector<1x32xf32> to vector<2x32xf32>
      %30 = arith.addf %27, %29 : vector<2x32xf32>
      %cst_21 = arith.constant 5.000000e-01 : f32
      %31 = vector.broadcast %cst_21 : f32 to vector<2x32xf32>
      %32 = arith.mulf %31, %30 : vector<2x32xf32>
      %cst_22 = arith.constant 0.707106769 : f32
      %33 = vector.broadcast %cst_22 : f32 to vector<2x32xf32>
      %34 = arith.mulf %30, %33 : vector<2x32xf32>
      %35 = math.erf %34 : vector<2x32xf32>
      %cst_23 = arith.constant 1.000000e+00 : f32
      %36 = vector.broadcast %cst_23 : f32 to vector<2x32xf32>
      %37 = arith.addf %36, %35 : vector<2x32xf32>
      %38 = arith.mulf %32, %37 : vector<2x32xf32>
      %c0_24 = arith.constant 0 : index
      %c0_25 = arith.constant 0 : index
      %39 = vector.load %arg6[%c0_24, %c0_25] : memref<32x128xf32, #tpu.memory_space<vmem>>, vector<32x128xf32>
      %cst_26 = arith.constant dense<0.000000e+00> : vector<2x128xf32>
      %40 = tpu.matmul %38, %39, %cst_26 {dimension_numbers = #tpu.dot_dimension_numbers<[1], [0], [0], [1], [0, 0, 1, 1], [], []>} : vector<2x32xf32>, vector<32x128xf32>, vector<2x128xf32> -> vector<2x128xf32>
      %c0_27 = arith.constant 0 : index
      %c0_28 = arith.constant 0 : index
      %41 = vector.load %arg7[%c0_27, %c0_28] : memref<1x128xf32, #tpu.memory_space<vmem>>, vector<1x128xf32>
      %42 = vector.broadcast %41 : vector<1x128xf32> to vector<2x128xf32>
      %43 = arith.addf %40, %42 : vector<2x128xf32>
      %c0_29 = arith.constant 0 : index
      %c0_30 = arith.constant 0 : index
      %44 = vector.load %arg8[%c0_29, %c0_30] : memref<2x128xf32, #tpu.memory_space<vmem>>, vector<2x128xf32>
      tpu.vector_store %arg8[%c0_29, %c0_30], %43 {strides = array<i32>} : memref<2x128xf32, #tpu.memory_space<vmem>>, vector<2x128xf32>,
    } else {
    }
    return
  }
  func.func @transform_0(%arg0: i32, %arg1: i32) -> (i32, i32, i32) {
    %c0_i32 = arith.constant 0 : i32
    %c0_i32_0 = arith.constant 0 : i32
    return %arg0, %arg1, %c0_i32 : i32, i32, i32
  }
  func.func @transform_1(%arg0: i32, %arg1: i32) -> (i32, i32) {
    %c0_i32 = arith.constant 0 : i32
    %c0_i32_0 = arith.constant 0 : i32
    return %arg0, %c0_i32 : i32, i32
  }
  func.func @transform_2(%arg0: i32, %arg1: i32) -> (i32, i32) {
    %c0_i32 = arith.constant 0 : i32
    %c0_i32_0 = arith.constant 0 : i32
    %c0_i32_1 = arith.constant 0 : i32
    return %c0_i32, %c0_i32_0 : i32, i32
  }
  func.func @transform_3(%arg0: i32, %arg1: i32) -> (i32, i32) {
    %c0_i32 = arith.constant 0 : i32
    %c0_i32_0 = arith.constant 0 : i32
    %c0_i32_1 = arith.constant 0 : i32
    return %c0_i32, %c0_i32_0 : i32, i32
  }
  func.func @transform_4(%arg0: i32, %arg1: i32) -> (i32, i32) {
    %c0_i32 = arith.constant 0 : i32
    %c0_i32_0 = arith.constant 0 : i32
    %c0_i32_1 = arith.constant 0 : i32
    return %c0_i32, %c0_i32_0 : i32, i32
  }
  func.func @transform_5(%arg0: i32, %arg1: i32) -> (i32, i32) {
    %c0_i32 = arith.constant 0 : i32
    %c0_i32_0 = arith.constant 0 : i32
    %c0_i32_1 = arith.constant 0 : i32
    return %c0_i32, %c0_i32_0 : i32, i32
  }
  func.func @transform_6(%arg0: i32, %arg1: i32) -> (i32, i32) {
    %c0_i32 = arith.constant 0 : i32
    %c0_i32_0 = arith.constant 0 : i32
    return %arg0, %c0_i32 : i32, i32
  }
}

</mosaic_0001>

<llo_original>
// kernel: tpu_custom_call.1
$region0: #{tpu_custom_call.1}
  #allocation0 [shape = 'u32[]', space=smem, size = 0x4, offset = 0x4, fixed_abs, tag = 'smem constant byte address 0x4 - core index']
  #allocation1 [shape = 'u32[72,128]{1,0:T(1,128)}', space=vmem, size = 0x9000, scoped, tag = 'internal scratch']
  #allocation2 [shape = 'f32[2,32]{1,0:T(2,128)}', space=vmem, size = 0x400, scoped, tag = 'scratch operand']
  %s0 = inlined_call_operand.hbm [shape: f32[2,8,32], index: 0, kind: input, shape index: {}]
  %s1 = inlined_call_operand.vmem [shape: s32[2,1], index: 1, kind: input, shape index: {}]
  %s2 = inlined_call_operand.hbm [shape: f32[32,32], index: 2, kind: input, shape index: {}]
  %s3 = inlined_call_operand.vmem [shape: f32[1,32], index: 3, kind: input, shape index: {}]
  %s4 = inlined_call_operand.hbm [shape: f32[32,128], index: 4, kind: input, shape index: {}]
  %s5 = inlined_call_operand.vmem [shape: f32[1,128], index: 5, kind: input, shape index: {}]
  %s6 = inlined_call_operand.hbm [shape: f32[2,128], index: 6, kind: output, shape index: {}]
  %s7 = sld [smem:[#allocation0]]
  $region54: #{tpu_custom_call.1} parent=0
    _
  %s9 = ssub.s32 1, %s7
  %s10 = scalar_select 0, %s9, %s7
  $region1: #{tpu_custom_call.1} parent=0
    #allocation3 [shape = 'u8[8192]{0}', space=vmem, size = 0x2000, scoped, tag = 'input window, operand 0, single buffered']
    #allocation4 [shape = 's32[1]{0}', space=sflag, size = 0x4, scoped, tag = 'scoped memory for tpu_custom_call.1']
    #allocation5 [shape = 's32[1]{0}', space=sflag, size = 0x4, scoped, tag = 'scoped memory for tpu_custom_call.1']
    #allocation6 [shape = 'u8[16384]{0}', space=vmem, size = 0x4000, scoped, tag = 'input window, operand 2, single buffered']
    #allocation7 [shape = 's32[1]{0}', space=sflag, size = 0x4, scoped, tag = 'scoped memory for tpu_custom_call.1']
    #allocation8 [shape = 'u8[16384]{0}', space=vmem, size = 0x4000, scoped, tag = 'input window, operand 4, single buffered']
    #allocation9 [shape = 'u8[1024]{0}', space=vmem, size = 0x400, scoped, tag = 'output window, operand 0, single buffered']
    %11 = vsyncpa [#allocation4], 0
    %12 = vsyncpa [#allocation7], 0
    %13 = vsyncpa [#allocation5], 0
    // Predicated region
    $region2: #{tpu_custom_call.1} parent=1 // pred_check
      _
    $region3: #{tpu_custom_call.1} parent=1 // pred_check_branch
      %15 = sbr.rel (0) target = $region5
    $region4: #{tpu_custom_call.1} parent=1 // pred_region
      %17 = vsyncadd [#allocation4], 0
      %s18 = sshll.u32 %s0, 4
      %s19 = int_to_ptr.hbm [resolvable:$true] %s18
      %s20 = sshll.u32 [#allocation3], 4
      %s21 = int_to_ptr.vmem [resolvable:$true] %s20
      %26 = dma.hbm_to_vmem [thread:$0]  %s19, 256, %s21, [#allocation4], 128, 128, 8
    $region5: #{tpu_custom_call.1} parent=1 // pred_fallthru
      _
    // Predicated region
    $region6: #{tpu_custom_call.1} parent=1 // pred_check
      _
    $region7: #{tpu_custom_call.1} parent=1 // pred_check_branch
      %28 = sbr.rel (0) target = $region9
    $region8: #{tpu_custom_call.1} parent=1 // pred_region
      _
    $region9: #{tpu_custom_call.1} parent=1 // pred_fallthru
      _
    // Predicated region
    $region10: #{tpu_custom_call.1} parent=1 // pred_check
      _
    $region11: #{tpu_custom_call.1} parent=1 // pred_check_branch
      %30 = sbr.rel (0) target = $region13
    $region12: #{tpu_custom_call.1} parent=1 // pred_region
      %32 = vsyncadd [#allocation7], 0
      %s33 = sshll.u32 %s2, 4
      %s34 = int_to_ptr.hbm [resolvable:$true] %s33
      %s35 = sshll.u32 [#allocation6], 4
      %s36 = int_to_ptr.vmem [resolvable:$true] %s35
      %41 = dma.hbm_to_vmem [thread:$0]  %s34, 512, %s36, [#allocation7], 128, 128, 8
    $region13: #{tpu_custom_call.1} parent=1 // pred_fallthru
      _
    // Predicated region
    $region14: #{tpu_custom_call.1} parent=1 // pred_check
      _
    $region15: #{tpu_custom_call.1} parent=1 // pred_check_branch
      %43 = sbr.rel (0) target = $region17
    $region16: #{tpu_custom_call.1} parent=1 // pred_region
      _
    $region17: #{tpu_custom_call.1} parent=1 // pred_fallthru
      _
    // Predicated region
    $region18: #{tpu_custom_call.1} parent=1 // pred_check
      _
    $region19: #{tpu_custom_call.1} parent=1 // pred_check_branch
      %45 = sbr.rel (0) target = $region21
    $region20: #{tpu_custom_call.1} parent=1 // pred_region
      %47 = vsyncadd [#allocation7], 0
      %s48 = sshll.u32 %s4, 4
      %s49 = int_to_ptr.hbm [resolvable:$true] %s48
      %s50 = sshll.u32 [#allocation8], 4
      %s51 = int_to_ptr.vmem [resolvable:$true] %s50
      %56 = dma.hbm_to_vmem [thread:$0]  %s49, 512, %s51, [#allocation7], 128, 128, 8
    $region21: #{tpu_custom_call.1} parent=1 // pred_fallthru
      _
    // Predicated region
    $region22: #{tpu_custom_call.1} parent=1 // pred_check
      _
    $region23: #{tpu_custom_call.1} parent=1 // pred_check_branch
      %58 = sbr.rel (0) target = $region25
    $region24: #{tpu_custom_call.1} parent=1 // pred_region
      _
    $region25: #{tpu_custom_call.1} parent=1 // pred_fallthru
      _
    // Predicated region
    $region26: #{tpu_custom_call.1} parent=1 // pred_check
      _
    $region27: #{tpu_custom_call.1} parent=1 // pred_check_branch
      %60 = sbr.rel (0) target = $region29
    $region28: #{tpu_custom_call.1} parent=1 // pred_region
      %62 = dma.done [#allocation4], 256
    $region29: #{tpu_custom_call.1} parent=1 // pred_fallthru
      _
    // Predicated region
    $region30: #{tpu_custom_call.1} parent=1 // pred_check
      _
    $region31: #{tpu_custom_call.1} parent=1 // pred_check_branch
      %64 = sbr.rel (0) target = $region33
    $region32: #{tpu_custom_call.1} parent=1 // pred_region
      %66 = dma.done [#allocation7], 512
    $region33: #{tpu_custom_call.1} parent=1 // pred_fallthru
      _
    // Predicated region
    $region34: #{tpu_custom_call.1} parent=1 // pred_check
      _
    $region35: #{tpu_custom_call.1} parent=1 // pred_check_branch
      %68 = sbr.rel (0) target = $region37
    $region36: #{tpu_custom_call.1} parent=1 // pred_region
      %70 = dma.done [#allocation7], 512
    $region37: #{tpu_custom_call.1} parent=1 // pred_fallthru
      _
    %p71 = scmp.eq.s32.totalorder 0, 0
    // Predicated region
    $region38: #{tpu_custom_call.1} parent=1 // pred_check
      %p72 = pneg %p71
    $region39: #{tpu_custom_call.1} parent=1 // pred_check_branch
      %74 = sbr.rel (%p72) target = $region41
    $region40: #{tpu_custom_call.1} parent=1 // pred_region
      %vm75 = vcmask 254976
      %76 = vst.msk [vmem:[#allocation2] sm:$0x3] %vm75, 0.0
    $region41: #{tpu_custom_call.1} parent=1 // pred_fallthru
      _
    %v77 = vld [vmem:[#allocation3] sm:$0xff]
    %v78 = vld [vmem:[#allocation3 + $0x8] sm:$0xff]
    %v79 = vld [vmem:[%s1] sm:$0x3]
    %v80 = vlaneseq
    %v81 = vshrl.u32 %v80, 7
    %s82 = smul.u32 0, 8
    %v83 = vstv %s82
    %v84 = vadd.s32 %v81, %v83
    %v85 = vrot.slane %v79, 1
    %v86 = vperm.slane %v79, 0
    %v87 = vperm.slane %v85, 0
    %88 = vset.pattern.permute.xlu0 0
    %89 = vperm.xlu0 %88, %v86
    %v90 = vpop.permute.xlu0 %89
    %91 = vset.pattern.permute.xlu0 0
    %92 = vperm.xlu0 %91, %v87
    %v93 = vpop.permute.xlu0 %92
    %vm94 = vcmp.lt.s32.totalorder %v84, %v90
    %vm95 = vcmp.lt.s32.totalorder %v84, %v93
    %v96 = vsel %vm94, %v77, 0.0
    %v97 = vsel %vm95, %v78, 0.0
    %vm98 = vcmask 261120
    %v99 = vsel %vm98, %v96, 0.0
    %v100 = vrot.slane %v99, 4
    %v101 = vadd.f32 %v99, %v100
    %v102 = vrot.slane %v101, 2
    %v103 = vadd.f32 %v101, %v102
    %v104 = vrot.slane %v103, 1
    %v105 = vadd.f32 %v103, %v104
    %v106 = vsel %vm98, %v97, 0.0
    %v107 = vrot.slane %v106, 4
    %v108 = vadd.f32 %v106, %v107
    %v109 = vrot.slane %v108, 2
    %v110 = vadd.f32 %v108, %v109
    %v111 = vrot.slane %v110, 1
    %v112 = vadd.f32 %v110, %v111
    %v113 = vld [vmem:[#allocation2] sm:$0x3]
    %vm116 = vcmask 1041409
    %v117 = vsel %vm116, %v112, %v105
    %v119 = vadd.f32 %v113, %v117
    %vm120 = vcmask 254976
    %121 = vst.msk [vmem:[#allocation2] sm:$0x3] %vm120, %v119
    // Predicated region
    $region42: #{tpu_custom_call.1} parent=1 // pred_check
      %p122 = pneg %p71
    $region43: #{tpu_custom_call.1} parent=1 // pred_check_branch
      %124 = sbr.rel (%p122) target = $region45
    $region44: #{tpu_custom_call.1} parent=1 // pred_region
      %v125 = vld [vmem:[#allocation2] sm:$0x3]
      %v126 = vld [vmem:[%s1] sm:$0x3]
      %v127 = vcvt.s32.f32 %v126
      %129 = vset.pattern.permute.xlu0 0
      %130 = vperm.xlu0 %129, %v127
      %v131 = vpop.permute.xlu0 %130
      %v133 = vrcp.pop %v131
      %v134 = vmul.f32 %v131, %v133
      %v135 = vsub.f32 1.0, %v134
      %v136 = vmul.f32 %v133, %v135
      %v137 = vadd.f32 %v133, %v136
      %vm138 = vweird.f32 %v131
      %vm139 = vweird.f32 %v133
      %vm140 = vmor %vm138, %vm139
      %v141 = vsel %vm140, %v133, %v137
      %v142 = vand.u32 2147483647, %v131
      %vm143 = vcmp.eq.f32.partialorder %v142, 8.507059e+37
      %v144 = vand.u32 %v131, 2147483648
      %v145 = vor.u32 1.1754944e-38, %v144
      %v146 = vsel %vm143, %v145, %v141
      %v147 = vmul.f32 %v125, %v146
      %v148 = vld [vmem:[#allocation6] sm:$0xff]
      %v149 = vld [vmem:[#allocation6 + $0x8] sm:$0xff]
      %v150 = vld [vmem:[#allocation6 + $0x10] sm:$0xff]
      %v151 = vld [vmem:[#allocation6 + $0x18] sm:$0xff]
      %v152 = vld [vmem:[%s3] sm:$0x1]
      %v154 = vperm.slane %v152, 0
      %v157 = vsel %vm98, %v147, 0
      %159 = vmatpush.msra.mxu0 0.0
      %160 = vmatpush.msra.mxu0 0.0
      %161 = vmatpush.msra.mxu0 0.0
      %162 = vmatpush.msra.mxu0 0.0
      %163 = vmatpush.msra.mxu0 0.0
      %164 = vmatpush.msra.mxu0 0.0
      %165 = vmatpush.msra.mxu0 0.0
      %166 = vmatpush.msra.mxu0 0.0
      %167 = vmatpush.msra.mxu0 0.0
      %168 = vmatpush.msra.mxu0 0.0
      %169 = vmatpush.msra.mxu0 0.0
      %170 = vmatpush.msra.mxu0 0.0
      %171 = vmatpush.msra.mxu0 %v151
      %172 = vmatpush.msra.mxu0 %v150
      %173 = vmatpush.msra.mxu0 %v149
      %174 = vmatpush.msra.mxu0 %v148
      %175 = vmatmul.f32.gmra.mxu0 %v157
      %v176 = vpop.f32.mrf.mxu0
      %v177 = vadd.f32 %v154, %v176
      %178 = vdwg.mxu0
      %v179 = vmul.f32 %v177, 0.5
      %v180 = vmul.f32 %v177, 0.70710677
      %v181 = vmul.f32 %v180, %v180
      %v182 = vmin.f32 16.0, %v181
      %v183 = vmul.f32 %v182, 2.1237322e-06
      %v184 = vadd.f32 %v183, 0.00028619796
      %v185 = vmul.f32 %v182, %v184
      %v186 = vadd.f32 %v185, 0.0036580483
      %v187 = vmul.f32 %v182, %v186
      %v188 = vadd.f32 %v187, 0.05243302
      %v189 = vmul.f32 %v182, %v188
      %v190 = vadd.f32 %v189, 0.18741608
      %v191 = vmul.f32 %v182, %v190
      %v192 = vadd.f32 %v191, 1.1283791
      %v193 = vmul.f32 %v180, %v192
      %v194 = vmul.f32 %v182, 3.8918573e-05
      %v195 = vadd.f32 %v194, 0.001143296
      %v196 = vmul.f32 %v182, %v195
      %v197 = vadd.f32 %v196, 0.014752088
      %v198 = vmul.f32 %v182, %v197
      %v199 = vadd.f32 %v198, 0.112945676
      %v200 = vmul.f32 %v182, %v199
      %v201 = vadd.f32 %v200, 0.4994258
      %v202 = vmul.f32 %v182, %v201
      %v203 = vadd.f32 %v202, 1.0
      %v204 = vrcp.pop %v203
      %v205 = vmul.f32 %v203, %v204
      %v206 = vsub.f32 1.0, %v205
      %v207 = vmul.f32 %v204, %v206
      %v208 = vadd.f32 %v204, %v207
      %vm209 = vweird.f32 %v203
      %vm210 = vweird.f32 %v204
      %vm211 = vmor %vm209, %vm210
      %v212 = vsel %vm211, %v204, %v208
      %v213 = vand.u32 2147483647, %v203
      %vm214 = vcmp.eq.f32.partialorder %v213, 8.507059e+37
      %v215 = vand.u32 %v203, 2147483648
      %v216 = vor.u32 1.1754944e-38, %v215
      %v217 = vsel %vm214, %v216, %v212
      %v218 = vmul.f32 %v193, %v217
      %v219 = vmin.f32 %v218, 1.0
      %v220 = vmax.f32 %v219, -1.0
      %v221 = vadd.f32 %v220, 1.0
      %v222 = vmul.f32 %v179, %v221
      %v223 = vld [vmem:[#allocation8] sm:$0xff]
      %v224 = vld [vmem:[#allocation8 + $0x8] sm:$0xff]
      %v225 = vld [vmem:[#allocation8 + $0x10] sm:$0xff]
      %v226 = vld [vmem:[#allocation8 + $0x18] sm:$0xff]
      %v227 = vld [vmem:[%s5] sm:$0x1]
      %v229 = vperm.slane %v227, 0
      %v232 = vsel %vm98, %v222, 0
      %234 = vmatpush.msra.mxu0 0.0
      %235 = vmatpush.msra.mxu0 0.0
      %236 = vmatpush.msra.mxu0 0.0
      %237 = vmatpush.msra.mxu0 0.0
      %238 = vmatpush.msra.mxu0 0.0
      %239 = vmatpush.msra.mxu0 0.0
      %240 = vmatpush.msra.mxu0 0.0
      %241 = vmatpush.msra.mxu0 0.0
      %242 = vmatpush.msra.mxu0 0.0
      %243 = vmatpush.msra.mxu0 0.0
      %244 = vmatpush.msra.mxu0 0.0
      %245 = vmatpush.msra.mxu0 0.0
      %246 = vmatpush.msra.mxu0 %v226
      %247 = vmatpush.msra.mxu0 %v225
      %248 = vmatpush.msra.mxu0 %v224
      %249 = vmatpush.msra.mxu0 %v223
      %250 = vmatmul.f32.gmra.mxu0 %v232
      %v251 = vpop.f32.mrf.mxu0
      %v252 = vadd.f32 %v229, %v251
      %253 = vdwg.mxu0
      %254 = vst [vmem:[#allocation9] sm:$0x3] %v252
    $region45: #{tpu_custom_call.1} parent=1 // pred_fallthru
      _
    // Predicated region
    $region46: #{tpu_custom_call.1} parent=1 // pred_check
      _
    $region47: #{tpu_custom_call.1} parent=1 // pred_check_branch
      %256 = sbr.rel (0) target = $region49
    $region48: #{tpu_custom_call.1} parent=1 // pred_region
      %258 = vsyncadd [#allocation5], 0
      %s260 = sshll.u32 [#allocation9], 4
      %s261 = int_to_ptr.vmem [resolvable:$true] %s260
      %s262 = sshll.u32 %s6, 4
      %s263 = int_to_ptr.hbm [resolvable:$true] %s262
      %265 = dma.vmem_to_hbm [thread:$0]  %s261, 32, %s263, [#allocation5]
    $region49: #{tpu_custom_call.1} parent=1 // pred_fallthru
      _
    // Predicated region
    $region50: #{tpu_custom_call.1} parent=1 // pred_check
      _
    $region51: #{tpu_custom_call.1} parent=1 // pred_check_branch
      %267 = sbr.rel (0) target = $region53
    $region52: #{tpu_custom_call.1} parent=1 // pred_region
      %269 = dma.done [#allocation5], 32
    $region53: #{tpu_custom_call.1} parent=1 // pred_fallthru
      _
    %270 = vsyncpa [#allocation4], 1
    %271 = vsyncpa [#allocation7], 1
    %272 = vsyncpa [#allocation5], 1

</llo_original>
